<compile_context>
chip_gen: v7x
topology: tpu7x:2x2x1
jax: 0.10.0
libtpu: 0.0.40
codegen_flags: <defaults>
</compile_context>

<pallas_src>
import functools

import jax
import jax.numpy as jnp
from jax import lax
from jax.experimental import pallas as pl
from jax.experimental.pallas import tpu as pltpu

# ---------------- problem sizes (small, consistent with the module) ----------------
N_NODES = 12               # total nodes (2 graphs of 6)
N_GRAPHS = 2
C_IN = 4                   # in_channels
C_OUT = 32                 # out_channels
C_POS = 3                  # pos_channels
F_MSG = C_IN * 2 + C_POS   # msg_nn input width = 11
EPS = 1e-5

# ---------------- packed-layout constants ----------------
F_MSG_PAD = 16             # feat_e lane width fed to the MXU (zero-padded cols)
C_IN_PAD = 8               # x lane width fed to the skip matmul (zero-padded cols)
E_CHUNK = 8                # edge-axis chunk size for the masked-max reduction

# node-slab lane offsets: six pre-broadcast [Np, C_OUT] parameter blocks first
# (32-lane aligned), then the odd-width node-major blocks (maskneg / P / x).
B_MSG_OFF, HE_OFF, GN_MS_OFF, GN_W_OFF, GN_B_OFF, B_FC_OFF = (i * C_OUT for i in range(6))
PARAM_LANES = 6 * C_OUT    # 192

# packed weight-buffer row offsets (all multiples of 8)
W_MSG_OFF = 0
W_FC_OFF = F_MSG_PAD                     # 16
W_SKIP_OFF = F_MSG_PAD + C_OUT           # 48
W_ROWS = W_SKIP_OFF + C_IN_PAD           # 56

MASK_NEG = -1.0e30                       # additive mask value (finite, max-absorbing)


def _round_up(v, m):
    return (v + m - 1) // m * m


def perconv_kernel(feat_ref,   # [Ep, F_MSG_PAD]  per-edge concatenated features (zero-padded)
                   slab_ref,   # [Np, 256]        packed node-major operands + params
                   w_ref,      # [W_ROWS, C_OUT]  packed [w_msg ; w_fc ; w_skip]
                   out_ref,    # [Np, C_OUT]
                   *, n_pad, e_pad, mask_off, p_off, x_off):
    # --- skip matmul first: depends only on x, so the LLO scheduler can hide it
    #     under the whole message / aggregation / GraphNorm chain. ---
    x_nodes = slab_ref[:, x_off:x_off + C_IN_PAD]                          # [Np, 8]
    skip = jnp.dot(x_nodes, w_ref[W_SKIP_OFF:W_SKIP_OFF + C_IN_PAD, :],
                   preferred_element_type=jnp.float32)                     # [Np, C_OUT]

    # --- edge messages on the MXU (bias deferred past the max; exact) ---
    msg = jnp.dot(feat_ref[...], w_ref[W_MSG_OFF:W_MSG_OFF + F_MSG_PAD, :],
                  preferred_element_type=jnp.float32)                      # [Ep, C_OUT]

    # --- masked max aggregation (aggr='max'): additive {0, -1e30} mask,
    #     reduced over the edge axis in 8-edge chunks (~16 live vregs/chunk). ---
    maskneg = slab_ref[:, mask_off:mask_off + e_pad]                       # [Np, Ep]
    agg = jnp.full((n_pad, C_OUT), -3.0e38, jnp.float32)
    for c in range(e_pad // E_CHUNK):            # static trip count (e_pad // 8)
        lo = c * E_CHUNK
        cand = (msg[lo:lo + E_CHUNK, :][None, :, :]
                + maskneg[:, lo:lo + E_CHUNK][:, :, None])                 # [Np, 8, C_OUT]
        agg = jnp.maximum(agg, jnp.max(cand, axis=1))

    b_msg = slab_ref[:, B_MSG_OFF:B_MSG_OFF + C_OUT]
    has_edge = slab_ref[:, HE_OFF:HE_OFF + C_OUT]
    agg = (agg + b_msg) * has_edge                                         # nodes w/o edges -> 0

    # --- GraphNorm: ONE propagation-matrix dot gives [segment_mean | segment E[agg^2]] ---
    pmat = slab_ref[:, p_off:p_off + n_pad]                                # [Np, Np]
    stats = jnp.dot(pmat, jnp.concatenate([agg, agg * agg], axis=1),
                    preferred_element_type=jnp.float32)                    # [Np, 2*C_OUT]
    mean = stats[:, :C_OUT]
    mean_sq = stats[:, C_OUT:]
    gn_ms = slab_ref[:, GN_MS_OFF:GN_MS_OFF + C_OUT]
    centered = agg - mean * gn_ms
    # E[(agg - ms*mean)^2] = E[agg^2] - ms*(2-ms)*mean^2  (clamped for rounding safety)
    var = jnp.maximum(mean_sq - (gn_ms * (2.0 - gn_ms)) * (mean * mean), 0.0)
    inv_std = lax.rsqrt(var + EPS)
    normed = (slab_ref[:, GN_W_OFF:GN_W_OFF + C_OUT] * centered * inv_std
              + slab_ref[:, GN_B_OFF:GN_B_OFF + C_OUT])

    # --- ReLU + fc, then add the already-computed skip path and bias ---
    h = jnp.maximum(normed, 0.0)
    out_ref[...] = (jnp.dot(h, w_ref[W_FC_OFF:W_FC_OFF + C_OUT, :],
                            preferred_element_type=jnp.float32)
                    + skip + slab_ref[:, B_FC_OFF:B_FC_OFF + C_OUT])


@jax.jit
def perconv_forward(x, pos, edge_index, batch, params):
    """x:[N,C_IN] f32, pos:[N,C_POS] f32, edge_index:[2,E] i32, batch:[N] i32."""
    n = x.shape[0]
    e = edge_index.shape[1]
    n_pad = _round_up(n, 8)
    e_pad = _round_up(e, E_CHUNK)

    src, dst = edge_index[0], edge_index[1]          # PyG: row=source j, col=target i

    # glue: gather per-edge features  [x_i, x_j - x_i, pos_j - pos_i], pad to [Ep, 16]
    x_i, x_j = x[dst], x[src]
    p_i, p_j = pos[dst], pos[src]
    feat_e = jnp.concatenate([x_i, x_j - x_i, p_j - p_i], axis=-1).astype(jnp.float32)
    feat_e = jnp.pad(feat_e, ((0, e_pad - e), (0, F_MSG_PAD - F_MSG)))

    # glue: additive max-mask ({0,-1e30}) and has-edge gate; padded edges never match
    dst_pad = jnp.full((e_pad,), -1, jnp.int32).at[:e].set(dst.astype(jnp.int32))
    incid = (jnp.arange(n_pad, dtype=jnp.int32)[:, None]
             == dst_pad[None, :]).astype(jnp.float32)                  # [Np, Ep]
    maskneg = (incid - 1.0) * (-MASK_NEG)                               # 1->0, 0->-1e30
    has_edge = (jnp.max(incid, axis=1, keepdims=True) > 0.0).astype(jnp.float32)

    # glue: GraphNorm segment-mean propagation matrix P = oh_nb @ diag(1/cnt) @ oh_bn
    batch_pad = jnp.full((n_pad,), -1, jnp.int32).at[:n].set(batch.astype(jnp.int32))
    oh_bn = (jnp.arange(N_GRAPHS, dtype=jnp.int32)[:, None]
             == batch_pad[None, :]).astype(jnp.float32)                # [B, Np]
    counts = jnp.sum(oh_bn, axis=1, keepdims=True)                     # [B, 1]
    p_mat = oh_bn.T @ (oh_bn / counts)                                 # [Np, Np]

    # glue: node features for the skip path, zero-padded to [Np, 8]
    x_pad = jnp.pad(x.astype(jnp.float32), ((0, n_pad - n), (0, C_IN_PAD - C_IN)))

    # glue: pack everything node-major into ONE lane-dense [Np, 256] slab
    def bcast(row):
        return jnp.broadcast_to(row.astype(jnp.float32), (n_pad, C_OUT))

    slab = jnp.concatenate([
        bcast(params["b_msg"]),
        jnp.broadcast_to(has_edge, (n_pad, C_OUT)),
        bcast(params["gn_ms"]),
        bcast(params["gn_w"]),
        bcast(params["gn_b"]),
        bcast(params["b_fc"]),
        maskneg,                                   # lanes [192, 192+Ep)
        p_mat,                                     # lanes [192+Ep, 192+Ep+Np)
        x_pad,                                     # lanes [.., ..+8)
    ], axis=1)
    slab_w = _round_up(slab.shape[1], 128)
    slab = jnp.pad(slab, ((0, 0), (0, slab_w - slab.shape[1])))

    # glue: pack the three weight matrices into one buffer at 8-aligned row offsets
    w_all = jnp.zeros((W_ROWS, C_OUT), jnp.float32)
    w_all = w_all.at[W_MSG_OFF:W_MSG_OFF + F_MSG].set(params["w_msg"])
    w_all = w_all.at[W_FC_OFF:W_FC_OFF + C_OUT].set(params["w_fc"])
    w_all = w_all.at[W_SKIP_OFF:W_SKIP_OFF + C_IN].set(params["w_skip"])

    mask_off = PARAM_LANES
    p_off = mask_off + e_pad
    x_off = p_off + n_pad
    kernel = functools.partial(perconv_kernel, n_pad=n_pad, e_pad=e_pad,
                               mask_off=mask_off, p_off=p_off, x_off=x_off)

    vmem = pl.BlockSpec(memory_space=pltpu.MemorySpace.VMEM)
    out = pl.pallas_call(
        kernel,
        out_shape=jax.ShapeDtypeStruct((n_pad, C_OUT), jnp.float32),
        in_specs=[vmem, vmem, vmem],
        out_specs=vmem,
    )(feat_e, slab, w_all)
    return out[:n]


def perconv_reference(x, pos, edge_index, batch, params):
    src, dst = edge_index[0], edge_index[1]
    x_i, x_j = x[dst], x[src]
    p_i, p_j = pos[dst], pos[src]
    feat = jnp.concatenate([x_i, x_j - x_i, p_j - p_i], axis=-1)
    msg = feat @ params["w_msg"] + params["b_msg"]
    agg = jax.ops.segment_max(msg, dst, num_segments=N_NODES)
    agg = jnp.where(jnp.isfinite(agg), agg, 0.0)
    ones = jnp.ones((N_NODES, 1), jnp.float32)
    counts = jax.ops.segment_sum(ones, batch, num_segments=N_GRAPHS)
    mean = jax.ops.segment_sum(agg, batch, num_segments=N_GRAPHS) / counts
    cen = agg - mean[batch] * params["gn_ms"]
    var = jax.ops.segment_sum(cen * cen, batch, num_segments=N_GRAPHS) / counts
    std = jnp.sqrt(var + EPS)
    normed = params["gn_w"] * cen / std[batch] + params["gn_b"]
    h = jnp.maximum(normed, 0.0)
    return h @ params["w_fc"] + params["b_fc"] + x @ params["w_skip"]


def init_params(key):
    ks = jax.random.split(key, 6)

    def lin(k, fan_in, shape):
        bound = 1.0 / jnp.sqrt(fan_in)
        return jax.random.uniform(k, shape, jnp.float32, -bound, bound)

    return {
        "w_msg": lin(ks[0], F_MSG, (F_MSG, C_OUT)),
        "b_msg": lin(ks[1], F_MSG, (1, C_OUT)),
        "gn_w": jnp.ones((1, C_OUT), jnp.float32),     # GraphNorm weight
        "gn_b": jnp.zeros((1, C_OUT), jnp.float32),    # GraphNorm bias
        "gn_ms": jnp.ones((1, C_OUT), jnp.float32),    # GraphNorm mean_scale
        "w_fc": lin(ks[2], C_OUT, (C_OUT, C_OUT)),
        "b_fc": lin(ks[3], C_OUT, (1, C_OUT)),
        "w_skip": lin(ks[4], C_IN, (C_IN, C_OUT)),     # in_channels != out_channels -> Linear(bias=False)
    }


if __name__ == "__main__":
    key = jax.random.PRNGKey(0)
    kx, kp, kw = jax.random.split(key, 3)

    x = jax.random.normal(kx, (N_NODES, C_IN), jnp.float32)
    pos = jax.random.normal(kp, (N_NODES, C_POS), jnp.float32)

    # Two graphs of 6 nodes each, bidirectional ring edges -> every node has 2 incoming edges.
    def ring(offset):
        idx = jnp.arange(6, dtype=jnp.int32) + offset
        nxt = jnp.roll(idx, -1)
        src = jnp.concatenate([idx, nxt])
        dst = jnp.concatenate([nxt, idx])
        return src, dst

    s0, d0 = ring(0)
    s1, d1 = ring(6)
    edge_index = jnp.stack([jnp.concatenate([s0, s1]), jnp.concatenate([d0, d1])])  # [2, 24]
    batch = jnp.concatenate([jnp.zeros(6, jnp.int32), jnp.ones(6, jnp.int32)])      # [12]

    params = init_params(kw)

    out = perconv_forward(x, pos, edge_index, batch, params)
    out = jax.block_until_ready(out)

    ref = perconv_reference(x, pos, edge_index, batch, params)
    assert out.shape == (N_NODES, C_OUT)
    assert jnp.allclose(out, ref, atol=1e-4, rtol=1e-4), float(jnp.max(jnp.abs(out - ref)))

    print("KERNEL_OK")
</pallas_src>

<mosaic_0001>
module attributes {stable_mosaic.version = 11 : i64} {
  func.func @perconv_kernel(%arg0: memref<24x16xf32, #tpu.memory_space<vmem>>, %arg1: memref<16x256xf32, #tpu.memory_space<vmem>>, %arg2: memref<56x32xf32, #tpu.memory_space<vmem>>, %arg3: memref<16x32xf32, #tpu.memory_space<vmem>>) attributes {dimension_semantics = [], scalar_prefetch = 0 : i64, scratch_operands = 0 : i64, tpu.core_type = #tpu.core_type<tc>} {
    %c0 = arith.constant 0 : index
    %c232 = arith.constant 232 : index
    %0 = vector.load %arg1[%c0, %c232] : memref<16x256xf32, #tpu.memory_space<vmem>>, vector<16x8xf32>
    %c48 = arith.constant 48 : index
    %c0_0 = arith.constant 0 : index
    %1 = vector.load %arg2[%c48, %c0_0] : memref<56x32xf32, #tpu.memory_space<vmem>>, vector<8x32xf32>
    %cst = arith.constant dense<0.000000e+00> : vector<16x32xf32>
    %2 = tpu.matmul %0, %1, %cst {dimension_numbers = #tpu.dot_dimension_numbers<[1], [0], [0], [1], [0, 0, 1, 1], [], []>} : vector<16x8xf32>, vector<8x32xf32>, vector<16x32xf32> -> vector<16x32xf32>
    %c0_1 = arith.constant 0 : index
    %c0_2 = arith.constant 0 : index
    %3 = vector.load %arg0[%c0_1, %c0_2] : memref<24x16xf32, #tpu.memory_space<vmem>>, vector<24x16xf32>
    %c0_3 = arith.constant 0 : index
    %c0_4 = arith.constant 0 : index
    %4 = vector.load %arg2[%c0_3, %c0_4] : memref<56x32xf32, #tpu.memory_space<vmem>>, vector<16x32xf32>
    %cst_5 = arith.constant dense<0.000000e+00> : vector<24x32xf32>
    %5 = tpu.matmul %3, %4, %cst_5 {dimension_numbers = #tpu.dot_dimension_numbers<[1], [0], [0], [1], [0, 0, 1, 1], [], []>} : vector<24x16xf32>, vector<16x32xf32>, vector<24x32xf32> -> vector<24x32xf32>
    %c0_6 = arith.constant 0 : index
    %c192 = arith.constant 192 : index
    %6 = vector.load %arg1[%c0_6, %c192] : memref<16x256xf32, #tpu.memory_space<vmem>>, vector<16x24xf32>
    %cst_7 = arith.constant -3.000000e+38 : f32
    %7 = vector.broadcast %cst_7 : f32 to vector<16x32xf32>
    %8 = vector.extract_strided_slice %5 {offsets = [0, 0], sizes = [8, 32], strides = [1, 1]} : vector<24x32xf32> to vector<8x32xf32>
    %9 = vector.shape_cast %8 : vector<8x32xf32> to vector<1x8x32xf32>
    %10 = vector.extract_strided_slice %6 {offsets = [0, 0], sizes = [16, 8], strides = [1, 1]} : vector<16x24xf32> to vector<16x8xf32>
    %11 = vector.shape_cast %10 : vector<16x8xf32> to vector<16x8x1xf32>
    %12 = vector.broadcast %9 : vector<1x8x32xf32> to vector<16x8x32xf32>
    %13 = vector.broadcast %11 : vector<16x8x1xf32> to vector<16x8x32xf32>
    %14 = arith.addf %12, %13 : vector<16x8x32xf32>
    %cst_8 = arith.constant dense<0xFF800000> : vector<16x32xf32>
    %15 = vector.multi_reduction <maximumf>, %14, %cst_8 [1] : vector<16x8x32xf32> to vector<16x32xf32>
    %16 = arith.maximumf %7, %15 : vector<16x32xf32>
    %17 = vector.extract_strided_slice %5 {offsets = [8, 0], sizes = [8, 32], strides = [1, 1]} : vector<24x32xf32> to vector<8x32xf32>
    %18 = vector.shape_cast %17 : vector<8x32xf32> to vector<1x8x32xf32>
    %19 = vector.extract_strided_slice %6 {offsets = [0, 8], sizes = [16, 8], strides = [1, 1]} : vector<16x24xf32> to vector<16x8xf32>
    %20 = vector.shape_cast %19 : vector<16x8xf32> to vector<16x8x1xf32>
    %21 = vector.broadcast %18 : vector<1x8x32xf32> to vector<16x8x32xf32>
    %22 = vector.broadcast %20 : vector<16x8x1xf32> to vector<16x8x32xf32>
    %23 = arith.addf %21, %22 : vector<16x8x32xf32>
    %cst_9 = arith.constant dense<0xFF800000> : vector<16x32xf32>
    %24 = vector.multi_reduction <maximumf>, %23, %cst_9 [1] : vector<16x8x32xf32> to vector<16x32xf32>
    %25 = arith.maximumf %16, %24 : vector<16x32xf32>
    %26 = vector.extract_strided_slice %5 {offsets = [16, 0], sizes = [8, 32], strides = [1, 1]} : vector<24x32xf32> to vector<8x32xf32>
    %27 = vector.shape_cast %26 : vector<8x32xf32> to vector<1x8x32xf32>
    %28 = vector.extract_strided_slice %6 {offsets = [0, 16], sizes = [16, 8], strides = [1, 1]} : vector<16x24xf32> to vector<16x8xf32>
    %29 = vector.shape_cast %28 : vector<16x8xf32> to vector<16x8x1xf32>
    %30 = vector.broadcast %27 : vector<1x8x32xf32> to vector<16x8x32xf32>
    %31 = vector.broadcast %29 : vector<16x8x1xf32> to vector<16x8x32xf32>
    %32 = arith.addf %30, %31 : vector<16x8x32xf32>
    %cst_10 = arith.constant dense<0xFF800000> : vector<16x32xf32>
    %33 = vector.multi_reduction <maximumf>, %32, %cst_10 [1] : vector<16x8x32xf32> to vector<16x32xf32>
    %34 = arith.maximumf %25, %33 : vector<16x32xf32>
    %c0_11 = arith.constant 0 : index
    %c0_12 = arith.constant 0 : index
    %35 = vector.load %arg1[%c0_11, %c0_12] : memref<16x256xf32, #tpu.memory_space<vmem>>, vector<16x32xf32>
    %c0_13 = arith.constant 0 : index
    %c32 = arith.constant 32 : index
    %36 = vector.load %arg1[%c0_13, %c32] : memref<16x256xf32, #tpu.memory_space<vmem>>, vector<16x32xf32>
    %37 = arith.addf %34, %35 : vector<16x32xf32>
    %38 = arith.mulf %37, %36 : vector<16x32xf32>
    %c0_14 = arith.constant 0 : index
    %c216 = arith.constant 216 : index
    %39 = vector.load %arg1[%c0_14, %c216] : memref<16x256xf32, #tpu.memory_space<vmem>>, vector<16x16xf32>
    %40 = arith.mulf %38, %38 : vector<16x32xf32>
    %41 = tpu.concatenate %38, %40 in 1 : vector<16x32xf32>, vector<16x32xf32> -> vector<16x64xf32>
    %cst_15 = arith.constant dense<0.000000e+00> : vector<16x64xf32>
    %42 = tpu.matmul %39, %41, %cst_15 {dimension_numbers = #tpu.dot_dimension_numbers<[1], [0], [0], [1], [0, 0, 1, 1], [], []>} : vector<16x16xf32>, vector<16x64xf32>, vector<16x64xf32> -> vector<16x64xf32>
    %43 = vector.extract_strided_slice %42 {offsets = [0, 0], sizes = [16, 32], strides = [1, 1]} : vector<16x64xf32> to vector<16x32xf32>
    %44 = vector.extract_strided_slice %42 {offsets = [0, 32], sizes = [16, 32], strides = [1, 1]} : vector<16x64xf32> to vector<16x32xf32>
    %c0_16 = arith.constant 0 : index
    %c64 = arith.constant 64 : index
    %45 = vector.load %arg1[%c0_16, %c64] : memref<16x256xf32, #tpu.memory_space<vmem>>, vector<16x32xf32>
    %46 = arith.mulf %43, %45 : vector<16x32xf32>
    %47 = arith.subf %38, %46 : vector<16x32xf32>
    %cst_17 = arith.constant 2.000000e+00 : f32
    %48 = vector.broadcast %cst_17 : f32 to vector<16x32xf32>
    %49 = arith.subf %48, %45 : vector<16x32xf32>
    %50 = arith.mulf %45, %49 : vector<16x32xf32>
    %51 = arith.mulf %43, %43 : vector<16x32xf32>
    %52 = arith.mulf %50, %51 : vector<16x32xf32>
    %53 = arith.subf %44, %52 : vector<16x32xf32>
    %cst_18 = arith.constant 0.000000e+00 : f32
    %54 = vector.broadcast %cst_18 : f32 to vector<16x32xf32>
    %55 = arith.maximumf %53, %54 : vector<16x32xf32>
    %cst_19 = arith.constant 9.99999974E-6 : f32
    %56 = vector.broadcast %cst_19 : f32 to vector<16x32xf32>
    %57 = arith.addf %55, %56 : vector<16x32xf32>
    %58 = math.rsqrt %57 : vector<16x32xf32>
    %c0_20 = arith.constant 0 : index
    %c96 = arith.constant 96 : index
    %59 = vector.load %arg1[%c0_20, %c96] : memref<16x256xf32, #tpu.memory_space<vmem>>, vector<16x32xf32>
    %60 = arith.mulf %59, %47 : vector<16x32xf32>
    %61 = arith.mulf %60, %58 : vector<16x32xf32>
    %c0_21 = arith.constant 0 : index
    %c128 = arith.constant 128 : index
    %62 = vector.load %arg1[%c0_21, %c128] : memref<16x256xf32, #tpu.memory_space<vmem>>, vector<16x32xf32>
    %63 = arith.addf %61, %62 : vector<16x32xf32>
    %cst_22 = arith.constant 0.000000e+00 : f32
    %64 = vector.broadcast %cst_22 : f32 to vector<16x32xf32>
    %65 = arith.maximumf %63, %64 : vector<16x32xf32>
    %c16 = arith.constant 16 : index
    %c0_23 = arith.constant 0 : index
    %66 = vector.load %arg2[%c16, %c0_23] : memref<56x32xf32, #tpu.memory_space<vmem>>, vector<32x32xf32>
    %cst_24 = arith.constant dense<0.000000e+00> : vector<16x32xf32>
    %67 = tpu.matmul %65, %66, %cst_24 {dimension_numbers = #tpu.dot_dimension_numbers<[1], [0], [0], [1], [0, 0, 1, 1], [], []>} : vector<16x32xf32>, vector<32x32xf32>, vector<16x32xf32> -> vector<16x32xf32>
    %68 = arith.addf %67, %2 : vector<16x32xf32>
    %c0_25 = arith.constant 0 : index
    %c160 = arith.constant 160 : index
    %69 = vector.load %arg1[%c0_25, %c160] : memref<16x256xf32, #tpu.memory_space<vmem>>, vector<16x32xf32>
    %70 = arith.addf %68, %69 : vector<16x32xf32>
    %c0_26 = arith.constant 0 : index
    %c0_27 = arith.constant 0 : index
    %71 = vector.load %arg3[%c0_26, %c0_27] : memref<16x32xf32, #tpu.memory_space<vmem>>, vector<16x32xf32>
    tpu.vector_store %arg3[%c0_26, %c0_27], %70 {strides = array<i32>} : memref<16x32xf32, #tpu.memory_space<vmem>>, vector<16x32xf32>,
    return
  }
}

</mosaic_0001>

<llo_original>
// kernel: sub.5
$region0: #{sub.5}
  #allocation0 [shape = 's32[1]{0}', space=sflag, size = 0x4, scoped, tag = 'scoped memory for sub.5']
  %s0 = inlined_call_operand.vmem [shape: f32[24,4], index: 0, kind: input, shape index: {}]
  %s1 = inlined_call_operand.vmem [shape: f32[24,4], index: 1, kind: input, shape index: {}]
  %s2 = inlined_call_operand.vmem [shape: f32[24,4], index: 2, kind: output, shape index: {}]
  %v3 = vld [vmem:[%s0] sm:$0xff]
  %v4 = vld [vmem:[%s1] sm:$0xff]
  %5 = xla_tuple %v3, %v4
  %6 = xla_tuple %5
  %v7 = vsub.f32 %v3, %v4
  %8 = xla_tuple %v7
  %9 = vst [vmem:[%s2] sm:$0xff] %v7
  %s10 = scalar_lea.vmem %s0, 8
  %v11 = vld [vmem:[%s10] sm:$0xff]
  %s12 = scalar_lea.vmem %s1, 8
  %v13 = vld [vmem:[%s12] sm:$0xff]
  %14 = xla_tuple %v11, %v13
  %15 = xla_tuple %14
  %v16 = vsub.f32 %v11, %v13
  %17 = xla_tuple %v16
  %s18 = scalar_lea.vmem %s2, 8
  %19 = vst [vmem:[%s18] sm:$0xff] %v16
  %s20 = scalar_lea.vmem %s0, 16
  %v21 = vld [vmem:[%s20] sm:$0xff]
  %s22 = scalar_lea.vmem %s1, 16
  %v23 = vld [vmem:[%s22] sm:$0xff]
  %24 = xla_tuple %v21, %v23
  %25 = xla_tuple %24
  %v26 = vsub.f32 %v21, %v23
  %27 = xla_tuple %v26
  %s28 = scalar_lea.vmem %s2, 16
  %29 = vst [vmem:[%s28] sm:$0xff] %v26

// kernel: sub.6
$region0: #{sub.6}
  #allocation0 [shape = 's32[1]{0}', space=sflag, size = 0x4, scoped, tag = 'scoped memory for sub.6']
  %s0 = inlined_call_operand.vmem [shape: f32[24,3], index: 0, kind: input, shape index: {}]
  %s1 = inlined_call_operand.vmem [shape: f32[24,3], index: 1, kind: input, shape index: {}]
  %s2 = inlined_call_operand.vmem [shape: f32[24,3], index: 2, kind: output, shape index: {}]
  %v3 = vld [vmem:[%s0] sm:$0xff]
  %v4 = vld [vmem:[%s1] sm:$0xff]
  %5 = xla_tuple %v3, %v4
  %6 = xla_tuple %5
  %v7 = vsub.f32 %v3, %v4
  %8 = xla_tuple %v7
  %9 = vst [vmem:[%s2] sm:$0xff] %v7
  %s10 = scalar_lea.vmem %s0, 8
  %v11 = vld [vmem:[%s10] sm:$0xff]
  %s12 = scalar_lea.vmem %s1, 8
  %v13 = vld [vmem:[%s12] sm:$0xff]
  %14 = xla_tuple %v11, %v13
  %15 = xla_tuple %14
  %v16 = vsub.f32 %v11, %v13
  %17 = xla_tuple %v16
  %s18 = scalar_lea.vmem %s2, 8
  %19 = vst [vmem:[%s18] sm:$0xff] %v16
  %s20 = scalar_lea.vmem %s0, 16
  %v21 = vld [vmem:[%s20] sm:$0xff]
  %s22 = scalar_lea.vmem %s1, 16
  %v23 = vld [vmem:[%s22] sm:$0xff]
  %24 = xla_tuple %v21, %v23
  %25 = xla_tuple %24
  %v26 = vsub.f32 %v21, %v23
  %27 = xla_tuple %v26
  %s28 = scalar_lea.vmem %s2, 16
  %29 = vst [vmem:[%s28] sm:$0xff] %v26

// kernel: perconv_forward.1
$region0: #{perconv_forward.1}
  #allocation0 [shape = 'u32[]', space=smem, size = 0x4, offset = 0x4, fixed_abs, tag = 'smem constant byte address 0x4 - core index']
  #allocation1 [shape = 'u32[144,128]{1,0:T(1,128)}', space=vmem, size = 0x12000, scoped, tag = 'internal scratch']
  %s0 = inlined_call_operand.vmem [shape: f32[24,16], index: 0, kind: input, shape index: {}]
  %s1 = inlined_call_operand.vmem [shape: f32[16,256], index: 1, kind: input, shape index: {}]
  %s2 = inlined_call_operand.vmem [shape: f32[56,32], index: 2, kind: input, shape index: {}]
  %s3 = inlined_call_operand.hbm [shape: f32[16,32], index: 3, kind: output, shape index: {}]
  %s4 = sld [smem:[#allocation0]]
  $region22: #{perconv_forward.1} parent=0
    _
  %s6 = ssub.s32 1, %s4
  %s7 = scalar_select 0, %s6, %s4
  $region1: #{perconv_forward.1} parent=0
    #allocation2 [shape = 'u8[8192]{0}', space=vmem, size = 0x2000, scoped, tag = 'output window, operand 0, single buffered']
    #allocation3 [shape = 's32[1]{0}', space=sflag, size = 0x4, scoped, tag = 'scoped memory for perconv_forward.1']
    %8 = vsyncpa [#allocation3], 0
    // Predicated region
    $region2: #{perconv_forward.1} parent=1 // pred_check
      _
    $region3: #{perconv_forward.1} parent=1 // pred_check_branch
      %10 = sbr.rel (0) target = $region5
    $region4: #{perconv_forward.1} parent=1 // pred_region
      _
    $region5: #{perconv_forward.1} parent=1 // pred_fallthru
      _
    // Predicated region
    $region6: #{perconv_forward.1} parent=1 // pred_check
      _
    $region7: #{perconv_forward.1} parent=1 // pred_check_branch
      %12 = sbr.rel (0) target = $region9
    $region8: #{perconv_forward.1} parent=1 // pred_region
      _
    $region9: #{perconv_forward.1} parent=1 // pred_fallthru
      _
    // Predicated region
    $region10: #{perconv_forward.1} parent=1 // pred_check
      _
    $region11: #{perconv_forward.1} parent=1 // pred_check_branch
      %14 = sbr.rel (0) target = $region13
    $region12: #{perconv_forward.1} parent=1 // pred_region
      _
    $region13: #{perconv_forward.1} parent=1 // pred_fallthru
      _
    %v15 = vld [vmem:[%s1 + $0x8] sm:$0xff]
    %v16 = vld [vmem:[%s1 + $0x18] sm:$0xff]
    %v17 = vld [vmem:[%s2 + $0x30] sm:$0xff]
    %20 = vrot.lane.b32.xlu0 %v15, 24
    %v21 = vpop.permute.xlu0 %20
    %22 = vrot.lane.b32.xlu0 %v16, 24
    %v23 = vpop.permute.xlu0 %22
    %vm24 = vcmask 64512
    %v25 = vsel %vm24, %v21, 0
    %v27 = vsel %vm24, %v23, 0
    %29 = vmatprep.subr.mxu0 0.0
    %30 = vmatpush1.msra.mxu0 %v17
    %31 = vmatprep.subr.mxu0 0.0
    %32 = vmatpush1.msra.mxu0 0.0
    %33 = vmatprep.subr.mxu0 0.0
    %34 = vmatpush1.msra.mxu0 0.0
    %35 = vmatprep.subr.mxu0 0.0
    %36 = vmatpush1.msra.mxu0 0.0
    %37 = vmatprep.subr.mxu0 0.0
    %38 = vmatpush1.msra.mxu0 0.0
    %39 = vmatprep.subr.mxu0 0.0
    %40 = vmatpush1.msra.mxu0 0.0
    %41 = vmatprep.subr.mxu0 0.0
    %42 = vmatpush1.msra.mxu0 0.0
    %43 = vmatprep.subr.mxu0 0.0
    %44 = vmatpush1.msra.mxu0 0.0
    %45 = vmatprep.subr.mxu0 0.0
    %46 = vmatpush1.msra.mxu0 0.0
    %47 = vmatprep.subr.mxu0 0.0
    %48 = vmatpush1.msra.mxu0 0.0
    %49 = vmatprep.subr.mxu0 0.0
    %50 = vmatpush1.msra.mxu0 0.0
    %51 = vmatprep.subr.mxu0 0.0
    %52 = vmatpush1.msra.mxu0 0.0
    %53 = vmatprep.subr.mxu0 0.0
    %54 = vmatpush1.msra.mxu0 0.0
    %55 = vmatprep.subr.mxu0 0.0
    %56 = vmatpush1.msra.mxu0 0.0
    %57 = vmatprep.subr.mxu0 0.0
    %58 = vmatpush1.msra.mxu0 0.0
    %59 = vmatprep.subr.mxu0 0.0
    %60 = vmatpush1.msra.mxu0 0.0
    %61 = vmatprep.subr.mxu0 0.0
    %62 = vmatpush1.msra.mxu0 0.0
    %63 = vmatprep.subr.mxu0 0.0
    %64 = vmatpush1.msra.mxu0 0.0
    %65 = vmatprep.subr.mxu0 0.0
    %66 = vmatpush1.msra.mxu0 0.0
    %67 = vmatprep.subr.mxu0 0.0
    %68 = vmatpush1.msra.mxu0 0.0
    %69 = vmatprep.subr.mxu0 0.0
    %70 = vmatpush1.msra.mxu0 0.0
    %71 = vmatprep.subr.mxu0 0.0
    %72 = vmatpush1.msra.mxu0 0.0
    %73 = vmatprep.subr.mxu0 0.0
    %74 = vmatpush1.msra.mxu0 0.0
    %75 = vmatprep.subr.mxu0 0.0
    %76 = vmatpush1.msra.mxu0 0.0
    %77 = vmatprep.subr.mxu0 0.0
    %78 = vmatpush1.msra.mxu0 0.0
    %79 = vmatprep.subr.mxu0 0.0
    %80 = vmatpush1.msra.mxu0 0.0
    %81 = vmatprep.subr.mxu0 0.0
    %82 = vmatpush1.msra.mxu0 0.0
    %83 = vmatprep.subr.mxu0 0.0
    %84 = vmatpush1.msra.mxu0 0.0
    %85 = vmatprep.subr.mxu0 0.0
    %86 = vmatpush1.msra.mxu0 0.0
    %87 = vmatprep.subr.mxu0 0.0
    %88 = vmatpush1.msra.mxu0 0.0
    %89 = vmatprep.subr.mxu0 0.0
    %90 = vmatpush1.msra.mxu0 0.0
    %91 = vmatprep.subr.mxu0 0.0
    %92 = vmatpush1.msra.mxu0 0.0
    %93 = vmatprep.mubr.f32.mxu0 0.0
    %94 = vmatmul.mubr.f32.gmra.mrb[0].mxu0 %v25
    %v95 = vpop.f32.mrb[0].mxu0
    %v96 = vadd.f32 0.0, %v95
    %v97 = vpop.f32.mrb[0].mxu0
    %98 = vmatprep.mubr.f32.mxu0 0.0
    %99 = vmatmul.mubr.f32.gmra.mrb[0].mxu0 %v27
    %v100 = vpop.f32.mrb[0].mxu0
    %v101 = vadd.f32 0.0, %v100
    %v102 = vpop.f32.mrb[0].mxu0
    %103 = vdwg.mxu0
    %v104 = vld [vmem:[%s0] sm:$0xff]
    %v105 = vld [vmem:[%s0 + $0x8] sm:$0xff]
    %v106 = vld [vmem:[%s0 + $0x10] sm:$0xff]
    %v107 = vld [vmem:[%s2] sm:$0xff]
    %v108 = vld [vmem:[%s2 + $0x8] sm:$0xff]
    %vm109 = vcmask 130048
    %v111 = vsel %vm109, %v104, 0
    %v114 = vsel %vm109, %v105, 0
    %v117 = vsel %vm109, %v106, 0
    %119 = vmatprep.subr.mxu0 0.0
    %120 = vmatpush1.msra.mxu0 %v107
    %121 = vmatprep.subr.mxu0 0.0
    %122 = vmatpush1.msra.mxu0 %v108
    %123 = vmatprep.subr.mxu0 0.0
    %124 = vmatpush1.msra.mxu0 0.0
    %125 = vmatprep.subr.mxu0 0.0
    %126 = vmatpush1.msra.mxu0 0.0
    %127 = vmatprep.subr.mxu0 0.0
    %128 = vmatpush1.msra.mxu0 0.0
    %129 = vmatprep.subr.mxu0 0.0
    %130 = vmatpush1.msra.mxu0 0.0
    %131 = vmatprep.subr.mxu0 0.0
    %132 = vmatpush1.msra.mxu0 0.0
    %133 = vmatprep.subr.mxu0 0.0
    %134 = vmatpush1.msra.mxu0 0.0
    %135 = vmatprep.subr.mxu0 0.0
    %136 = vmatpush1.msra.mxu0 0.0
    %137 = vmatprep.subr.mxu0 0.0
    %138 = vmatpush1.msra.mxu0 0.0
    %139 = vmatprep.subr.mxu0 0.0
    %140 = vmatpush1.msra.mxu0 0.0
    %141 = vmatprep.subr.mxu0 0.0
    %142 = vmatpush1.msra.mxu0 0.0
    %143 = vmatprep.subr.mxu0 0.0
    %144 = vmatpush1.msra.mxu0 0.0
    %145 = vmatprep.subr.mxu0 0.0
    %146 = vmatpush1.msra.mxu0 0.0
    %147 = vmatprep.subr.mxu0 0.0
    %148 = vmatpush1.msra.mxu0 0.0
    %149 = vmatprep.subr.mxu0 0.0
    %150 = vmatpush1.msra.mxu0 0.0
    %151 = vmatprep.subr.mxu0 0.0
    %152 = vmatpush1.msra.mxu0 0.0
    %153 = vmatprep.subr.mxu0 0.0
    %154 = vmatpush1.msra.mxu0 0.0
    %155 = vmatprep.subr.mxu0 0.0
    %156 = vmatpush1.msra.mxu0 0.0
    %157 = vmatprep.subr.mxu0 0.0
    %158 = vmatpush1.msra.mxu0 0.0
    %159 = vmatprep.subr.mxu0 0.0
    %160 = vmatpush1.msra.mxu0 0.0
    %161 = vmatprep.subr.mxu0 0.0
    %162 = vmatpush1.msra.mxu0 0.0
    %163 = vmatprep.subr.mxu0 0.0
    %164 = vmatpush1.msra.mxu0 0.0
    %165 = vmatprep.subr.mxu0 0.0
    %166 = vmatpush1.msra.mxu0 0.0
    %167 = vmatprep.subr.mxu0 0.0
    %168 = vmatpush1.msra.mxu0 0.0
    %169 = vmatprep.subr.mxu0 0.0
    %170 = vmatpush1.msra.mxu0 0.0
    %171 = vmatprep.subr.mxu0 0.0
    %172 = vmatpush1.msra.mxu0 0.0
    %173 = vmatprep.subr.mxu0 0.0
    %174 = vmatpush1.msra.mxu0 0.0
    %175 = vmatprep.subr.mxu0 0.0
    %176 = vmatpush1.msra.mxu0 0.0
    %177 = vmatprep.subr.mxu0 0.0
    %178 = vmatpush1.msra.mxu0 0.0
    %179 = vmatprep.subr.mxu0 0.0
    %180 = vmatpush1.msra.mxu0 0.0
    %181 = vmatprep.subr.mxu0 0.0
    %182 = vmatpush1.msra.mxu0 0.0
    %183 = vmatprep.mubr.f32.mxu0 0.0
    %184 = vmatmul.mubr.f32.gmra.mrb[0].mxu0 %v111
    %v185 = vpop.f32.mrb[0].mxu0
    %v186 = vadd.f32 0.0, %v185
    %v187 = vpop.f32.mrb[0].mxu0
    %188 = vmatprep.mubr.f32.mxu0 0.0
    %189 = vmatmul.mubr.f32.gmra.mrb[0].mxu0 %v114
    %v190 = vpop.f32.mrb[0].mxu0
    %v191 = vadd.f32 0.0, %v190
    %v192 = vpop.f32.mrb[0].mxu0
    %193 = vmatprep.mubr.f32.mxu0 0.0
    %194 = vmatmul.mubr.f32.gmra.mrb[0].mxu0 %v117
    %v195 = vpop.f32.mrb[0].mxu0
    %v196 = vadd.f32 0.0, %v195
    %v197 = vpop.f32.mrb[0].mxu0
    %198 = vdwg.mxu0
    %v199 = vlaneseq
    %v200 = vshrl.u32 %v199, 7
    %v201 = vsub.s32 0, %v200
    %v202 = vrot.slane %v15, %v201
    %s204 = sor.u32 256, 64
    %205 = vbcast.lane.b32.xlu0 %v202, %s204
    %v206 = vpop.permute.xlu0 %205
    %v207 = vlaneseq
    %v208 = vshrl.u32 %v207, 7
    %v209 = vsub.s32 1, %v208
    %v210 = vrot.slane %v15, %v209
    %s212 = sor.u32 256, 64
    %213 = vbcast.lane.b32.xlu0 %v210, %s212
    %v214 = vpop.permute.xlu0 %213
    %v215 = vlaneseq
    %v216 = vshrl.u32 %v215, 7
    %v217 = vsub.s32 2, %v216
    %v218 = vrot.slane %v15, %v217
    %s220 = sor.u32 256, 64
    %221 = vbcast.lane.b32.xlu0 %v218, %s220
    %v222 = vpop.permute.xlu0 %221
    %v223 = vlaneseq
    %v224 = vshrl.u32 %v223, 7
    %v225 = vsub.s32 3, %v224
    %v226 = vrot.slane %v15, %v225
    %s228 = sor.u32 256, 64
    %229 = vbcast.lane.b32.xlu0 %v226, %s228
    %v230 = vpop.permute.xlu0 %229
    %v231 = vlaneseq
    %v232 = vshrl.u32 %v231, 7
    %v233 = vsub.s32 4, %v232
    %v234 = vrot.slane %v15, %v233
    %s236 = sor.u32 256, 64
    %237 = vbcast.lane.b32.xlu0 %v234, %s236
    %v238 = vpop.permute.xlu0 %237
    %v239 = vlaneseq
    %v240 = vshrl.u32 %v239, 7
    %v241 = vsub.s32 5, %v240
    %v242 = vrot.slane %v15, %v241
    %s244 = sor.u32 256, 64
    %245 = vbcast.lane.b32.xlu0 %v242, %s244
    %v246 = vpop.permute.xlu0 %245
    %v247 = vlaneseq
    %v248 = vshrl.u32 %v247, 7
    %v249 = vsub.s32 6, %v248
    %v250 = vrot.slane %v15, %v249
    %s252 = sor.u32 256, 64
    %253 = vbcast.lane.b32.xlu0 %v250, %s252
    %v254 = vpop.permute.xlu0 %253
    %v255 = vlaneseq
    %v256 = vshrl.u32 %v255, 7
    %v257 = vsub.s32 7, %v256
    %v258 = vrot.slane %v15, %v257
    %s260 = sor.u32 256, 64
    %261 = vbcast.lane.b32.xlu0 %v258, %s260
    %v262 = vpop.permute.xlu0 %261
    %v263 = vlaneseq
    %v264 = vshrl.u32 %v263, 7
    %v265 = vsub.s32 0, %v264
    %v266 = vrot.slane %v16, %v265
    %s268 = sor.u32 256, 64
    %269 = vbcast.lane.b32.xlu0 %v266, %s268
    %v270 = vpop.permute.xlu0 %269
    %v271 = vlaneseq
    %v272 = vshrl.u32 %v271, 7
    %v273 = vsub.s32 1, %v272
    %v274 = vrot.slane %v16, %v273
    %s276 = sor.u32 256, 64
    %277 = vbcast.lane.b32.xlu0 %v274, %s276
    %v278 = vpop.permute.xlu0 %277
    %v279 = vlaneseq
    %v280 = vshrl.u32 %v279, 7
    %v281 = vsub.s32 2, %v280
    %v282 = vrot.slane %v16, %v281
    %s284 = sor.u32 256, 64
    %285 = vbcast.lane.b32.xlu0 %v282, %s284
    %v286 = vpop.permute.xlu0 %285
    %v287 = vlaneseq
    %v288 = vshrl.u32 %v287, 7
    %v289 = vsub.s32 3, %v288
    %v290 = vrot.slane %v16, %v289
    %s292 = sor.u32 256, 64
    %293 = vbcast.lane.b32.xlu0 %v290, %s292
    %v294 = vpop.permute.xlu0 %293
    %v295 = vlaneseq
    %v296 = vshrl.u32 %v295, 7
    %v297 = vsub.s32 4, %v296
    %v298 = vrot.slane %v16, %v297
    %s300 = sor.u32 256, 64
    %301 = vbcast.lane.b32.xlu0 %v298, %s300
    %v302 = vpop.permute.xlu0 %301
    %v303 = vlaneseq
    %v304 = vshrl.u32 %v303, 7
    %v305 = vsub.s32 5, %v304
    %v306 = vrot.slane %v16, %v305
    %s308 = sor.u32 256, 64
    %309 = vbcast.lane.b32.xlu0 %v306, %s308
    %v310 = vpop.permute.xlu0 %309
    %v311 = vlaneseq
    %v312 = vshrl.u32 %v311, 7
    %v313 = vsub.s32 6, %v312
    %v314 = vrot.slane %v16, %v313
    %s316 = sor.u32 256, 64
    %317 = vbcast.lane.b32.xlu0 %v314, %s316
    %v318 = vpop.permute.xlu0 %317
    %v319 = vlaneseq
    %v320 = vshrl.u32 %v319, 7
    %v321 = vsub.s32 7, %v320
    %v322 = vrot.slane %v16, %v321
    %s324 = sor.u32 256, 64
    %325 = vbcast.lane.b32.xlu0 %v322, %s324
    %v326 = vpop.permute.xlu0 %325
    %v327 = vadd.f32 %v186, %v206
    %v328 = vadd.f32 %v186, %v214
    %v329 = vadd.f32 %v186, %v222
    %v330 = vadd.f32 %v186, %v230
    %v331 = vadd.f32 %v186, %v238
    %v332 = vadd.f32 %v186, %v246
    %v333 = vadd.f32 %v186, %v254
    %v334 = vadd.f32 %v186, %v262
    %v335 = vadd.f32 %v186, %v270
    %v336 = vadd.f32 %v186, %v278
    %v337 = vadd.f32 %v186, %v286
    %v338 = vadd.f32 %v186, %v294
    %v339 = vadd.f32 %v186, %v302
    %v340 = vadd.f32 %v186, %v310
    %v341 = vadd.f32 %v186, %v318
    %v342 = vadd.f32 %v186, %v326
    %vm343 = vcmask 261120
    %v344 = vsel %vm343, %v327, -inf
    %v345 = vrot.slane %v344, 4
    %v346 = vmax.f32 %v344, %v345
    %v347 = vrot.slane %v346, 2
    %v348 = vmax.f32 %v346, %v347
    %v349 = vrot.slane %v348, 1
    %v350 = vmax.f32 %v348, %v349
    %v351 = vsel %vm343, %v328, -inf
    %v352 = vrot.slane %v351, 4
    %v353 = vmax.f32 %v351, %v352
    %v354 = vrot.slane %v353, 2
    %v355 = vmax.f32 %v353, %v354
    %v356 = vrot.slane %v355, 1
    %v357 = vmax.f32 %v355, %v356
    %v358 = vsel %vm343, %v329, -inf
    %v359 = vrot.slane %v358, 4
    %v360 = vmax.f32 %v358, %v359
    %v361 = vrot.slane %v360, 2
    %v362 = vmax.f32 %v360, %v361
    %v363 = vrot.slane %v362, 1
    %v364 = vmax.f32 %v362, %v363
    %v365 = vsel %vm343, %v330, -inf
    %v366 = vrot.slane %v365, 4
    %v367 = vmax.f32 %v365, %v366
    %v368 = vrot.slane %v367, 2
    %v369 = vmax.f32 %v367, %v368
    %v370 = vrot.slane %v369, 1
    %v371 = vmax.f32 %v369, %v370
    %v372 = vsel %vm343, %v331, -inf
    %v373 = vrot.slane %v372, 4
    %v374 = vmax.f32 %v372, %v373
    %v375 = vrot.slane %v374, 2
    %v376 = vmax.f32 %v374, %v375
    %v377 = vrot.slane %v376, 1
    %v378 = vmax.f32 %v376, %v377
    %v379 = vsel %vm343, %v332, -inf
    %v380 = vrot.slane %v379, 4
    %v381 = vmax.f32 %v379, %v380
    %v382 = vrot.slane %v381, 2
    %v383 = vmax.f32 %v381, %v382
    %v384 = vrot.slane %v383, 1
    %v385 = vmax.f32 %v383, %v384
    %v386 = vsel %vm343, %v333, -inf
    %v387 = vrot.slane %v386, 4
    %v388 = vmax.f32 %v386, %v387
    %v389 = vrot.slane %v388, 2
    %v390 = vmax.f32 %v388, %v389
    %v391 = vrot.slane %v390, 1
    %v392 = vmax.f32 %v390, %v391
    %v393 = vsel %vm343, %v334, -inf
    %v394 = vrot.slane %v393, 4
    %v395 = vmax.f32 %v393, %v394
    %v396 = vrot.slane %v395, 2
    %v397 = vmax.f32 %v395, %v396
    %v398 = vrot.slane %v397, 1
    %v399 = vmax.f32 %v397, %v398
    %v400 = vsel %vm343, %v335, -inf
    %v401 = vrot.slane %v400, 4
    %v402 = vmax.f32 %v400, %v401
    %v403 = vrot.slane %v402, 2
    %v404 = vmax.f32 %v402, %v403
    %v405 = vrot.slane %v404, 1
    %v406 = vmax.f32 %v404, %v405
    %v407 = vsel %vm343, %v336, -inf
    %v408 = vrot.slane %v407, 4
    %v409 = vmax.f32 %v407, %v408
    %v410 = vrot.slane %v409, 2
    %v411 = vmax.f32 %v409, %v410
    %v412 = vrot.slane %v411, 1
    %v413 = vmax.f32 %v411, %v412
    %v414 = vsel %vm343, %v337, -inf
    %v415 = vrot.slane %v414, 4
    %v416 = vmax.f32 %v414, %v415
    %v417 = vrot.slane %v416, 2
    %v418 = vmax.f32 %v416, %v417
    %v419 = vrot.slane %v418, 1
    %v420 = vmax.f32 %v418, %v419
    %v421 = vsel %vm343, %v338, -inf
    %v422 = vrot.slane %v421, 4
    %v423 = vmax.f32 %v421, %v422
    %v424 = vrot.slane %v423, 2
    %v425 = vmax.f32 %v423, %v424
    %v426 = vrot.slane %v425, 1
    %v427 = vmax.f32 %v425, %v426
    %v428 = vsel %vm343, %v339, -inf
    %v429 = vrot.slane %v428, 4
    %v430 = vmax.f32 %v428, %v429
    %v431 = vrot.slane %v430, 2
    %v432 = vmax.f32 %v430, %v431
    %v433 = vrot.slane %v432, 1
    %v434 = vmax.f32 %v432, %v433
    %v435 = vsel %vm343, %v340, -inf
    %v436 = vrot.slane %v435, 4
    %v437 = vmax.f32 %v435, %v436
    %v438 = vrot.slane %v437, 2
    %v439 = vmax.f32 %v437, %v438
    %v440 = vrot.slane %v439, 1
    %v441 = vmax.f32 %v439, %v440
    %v442 = vsel %vm343, %v341, -inf
    %v443 = vrot.slane %v442, 4
    %v444 = vmax.f32 %v442, %v443
    %v445 = vrot.slane %v444, 2
    %v446 = vmax.f32 %v444, %v445
    %v447 = vrot.slane %v446, 1
    %v448 = vmax.f32 %v446, %v447
    %v449 = vsel %vm343, %v342, -inf
    %v450 = vrot.slane %v449, 4
    %v451 = vmax.f32 %v449, %v450
    %v452 = vrot.slane %v451, 2
    %v453 = vmax.f32 %v451, %v452
    %v454 = vrot.slane %v453, 1
    %v455 = vmax.f32 %v453, %v454
    %v456 = vmax.f32 %v350, -3e+38
    %v457 = vmax.f32 %v357, -3e+38
    %v458 = vmax.f32 %v364, -3e+38
    %v459 = vmax.f32 %v371, -3e+38
    %v460 = vmax.f32 %v378, -3e+38
    %v461 = vmax.f32 %v385, -3e+38
    %v462 = vmax.f32 %v392, -3e+38
    %v463 = vmax.f32 %v399, -3e+38
    %v464 = vmax.f32 %v406, -3e+38
    %v465 = vmax.f32 %v413, -3e+38
    %v466 = vmax.f32 %v420, -3e+38
    %v467 = vmax.f32 %v427, -3e+38
    %v468 = vmax.f32 %v434, -3e+38
    %v469 = vmax.f32 %v441, -3e+38
    %v470 = vmax.f32 %v448, -3e+38
    %v471 = vmax.f32 %v455, -3e+38
    %s473 = sor.u32 256, 72
    %474 = vbcast.lane.b32.xlu0 %v202, %s473
    %v475 = vpop.permute.xlu0 %474
    %s477 = sor.u32 256, 72
    %478 = vbcast.lane.b32.xlu0 %v210, %s477
    %v479 = vpop.permute.xlu0 %478
    %s481 = sor.u32 256, 72
    %482 = vbcast.lane.b32.xlu0 %v218, %s481
    %v483 = vpop.permute.xlu0 %482
    %s485 = sor.u32 256, 72
    %486 = vbcast.lane.b32.xlu0 %v226, %s485
    %v487 = vpop.permute.xlu0 %486
    %s489 = sor.u32 256, 72
    %490 = vbcast.lane.b32.xlu0 %v234, %s489
    %v491 = vpop.permute.xlu0 %490
    %s493 = sor.u32 256, 72
    %494 = vbcast.lane.b32.xlu0 %v242, %s493
    %v495 = vpop.permute.xlu0 %494
    %s497 = sor.u32 256, 72
    %498 = vbcast.lane.b32.xlu0 %v250, %s497
    %v499 = vpop.permute.xlu0 %498
    %s501 = sor.u32 256, 72
    %502 = vbcast.lane.b32.xlu0 %v258, %s501
    %v503 = vpop.permute.xlu0 %502
    %s505 = sor.u32 256, 72
    %506 = vbcast.lane.b32.xlu0 %v266, %s505
    %v507 = vpop.permute.xlu0 %506
    %s509 = sor.u32 256, 72
    %510 = vbcast.lane.b32.xlu0 %v274, %s509
    %v511 = vpop.permute.xlu0 %510
    %s513 = sor.u32 256, 72
    %514 = vbcast.lane.b32.xlu0 %v282, %s513
    %v515 = vpop.permute.xlu0 %514
    %s517 = sor.u32 256, 72
    %518 = vbcast.lane.b32.xlu0 %v290, %s517
    %v519 = vpop.permute.xlu0 %518
    %s521 = sor.u32 256, 72
    %522 = vbcast.lane.b32.xlu0 %v298, %s521
    %v523 = vpop.permute.xlu0 %522
    %s525 = sor.u32 256, 72
    %526 = vbcast.lane.b32.xlu0 %v306, %s525
    %v527 = vpop.permute.xlu0 %526
    %s529 = sor.u32 256, 72
    %530 = vbcast.lane.b32.xlu0 %v314, %s529
    %v531 = vpop.permute.xlu0 %530
    %s533 = sor.u32 256, 72
    %534 = vbcast.lane.b32.xlu0 %v322, %s533
    %v535 = vpop.permute.xlu0 %534
    %v536 = vadd.f32 %v191, %v475
    %v537 = vadd.f32 %v191, %v479
    %v538 = vadd.f32 %v191, %v483
    %v539 = vadd.f32 %v191, %v487
    %v540 = vadd.f32 %v191, %v491
    %v541 = vadd.f32 %v191, %v495
    %v542 = vadd.f32 %v191, %v499
    %v543 = vadd.f32 %v191, %v503
    %v544 = vadd.f32 %v191, %v507
    %v545 = vadd.f32 %v191, %v511
    %v546 = vadd.f32 %v191, %v515
    %v547 = vadd.f32 %v191, %v519
    %v548 = vadd.f32 %v191, %v523
    %v549 = vadd.f32 %v191, %v527
    %v550 = vadd.f32 %v191, %v531
    %v551 = vadd.f32 %v191, %v535
    %v552 = vsel %vm343, %v536, -inf
    %v553 = vrot.slane %v552, 4
    %v554 = vmax.f32 %v552, %v553
    %v555 = vrot.slane %v554, 2
    %v556 = vmax.f32 %v554, %v555
    %v557 = vrot.slane %v556, 1
    %v558 = vmax.f32 %v556, %v557
    %v559 = vsel %vm343, %v537, -inf
    %v560 = vrot.slane %v559, 4
    %v561 = vmax.f32 %v559, %v560
    %v562 = vrot.slane %v561, 2
    %v563 = vmax.f32 %v561, %v562
    %v564 = vrot.slane %v563, 1
    %v565 = vmax.f32 %v563, %v564
    %v566 = vsel %vm343, %v538, -inf
    %v567 = vrot.slane %v566, 4
    %v568 = vmax.f32 %v566, %v567
    %v569 = vrot.slane %v568, 2
    %v570 = vmax.f32 %v568, %v569
    %v571 = vrot.slane %v570, 1
    %v572 = vmax.f32 %v570, %v571
    %v573 = vsel %vm343, %v539, -inf
    %v574 = vrot.slane %v573, 4
    %v575 = vmax.f32 %v573, %v574
    %v576 = vrot.slane %v575, 2
    %v577 = vmax.f32 %v575, %v576
    %v578 = vrot.slane %v577, 1
    %v579 = vmax.f32 %v577, %v578
    %v580 = vsel %vm343, %v540, -inf
    %v581 = vrot.slane %v580, 4
    %v582 = vmax.f32 %v580, %v581
    %v583 = vrot.slane %v582, 2
    %v584 = vmax.f32 %v582, %v583
    %v585 = vrot.slane %v584, 1
    %v586 = vmax.f32 %v584, %v585
    %v587 = vsel %vm343, %v541, -inf
    %v588 = vrot.slane %v587, 4
    %v589 = vmax.f32 %v587, %v588
    %v590 = vrot.slane %v589, 2
    %v591 = vmax.f32 %v589, %v590
    %v592 = vrot.slane %v591, 1
    %v593 = vmax.f32 %v591, %v592
    %v594 = vsel %vm343, %v542, -inf
    %v595 = vrot.slane %v594, 4
    %v596 = vmax.f32 %v594, %v595
    %v597 = vrot.slane %v596, 2
    %v598 = vmax.f32 %v596, %v597
    %v599 = vrot.slane %v598, 1
    %v600 = vmax.f32 %v598, %v599
    %v601 = vsel %vm343, %v543, -inf
    %v602 = vrot.slane %v601, 4
    %v603 = vmax.f32 %v601, %v602
    %v604 = vrot.slane %v603, 2
    %v605 = vmax.f32 %v603, %v604
    %v606 = vrot.slane %v605, 1
    %v607 = vmax.f32 %v605, %v606
    %v608 = vsel %vm343, %v544, -inf
    %v609 = vrot.slane %v608, 4
    %v610 = vmax.f32 %v608, %v609
    %v611 = vrot.slane %v610, 2
    %v612 = vmax.f32 %v610, %v611
    %v613 = vrot.slane %v612, 1
    %v614 = vmax.f32 %v612, %v613
    %v615 = vsel %vm343, %v545, -inf
    %v616 = vrot.slane %v615, 4
    %v617 = vmax.f32 %v615, %v616
    %v618 = vrot.slane %v617, 2
    %v619 = vmax.f32 %v617, %v618
    %v620 = vrot.slane %v619, 1
    %v621 = vmax.f32 %v619, %v620
    %v622 = vsel %vm343, %v546, -inf
    %v623 = vrot.slane %v622, 4
    %v624 = vmax.f32 %v622, %v623
    %v625 = vrot.slane %v624, 2
    %v626 = vmax.f32 %v624, %v625
    %v627 = vrot.slane %v626, 1
    %v628 = vmax.f32 %v626, %v627
    %v629 = vsel %vm343, %v547, -inf
    %v630 = vrot.slane %v629, 4
    %v631 = vmax.f32 %v629, %v630
    %v632 = vrot.slane %v631, 2
    %v633 = vmax.f32 %v631, %v632
    %v634 = vrot.slane %v633, 1
    %v635 = vmax.f32 %v633, %v634
    %v636 = vsel %vm343, %v548, -inf
    %v637 = vrot.slane %v636, 4
    %v638 = vmax.f32 %v636, %v637
    %v639 = vrot.slane %v638, 2
    %v640 = vmax.f32 %v638, %v639
    %v641 = vrot.slane %v640, 1
    %v642 = vmax.f32 %v640, %v641
    %v643 = vsel %vm343, %v549, -inf
    %v644 = vrot.slane %v643, 4
    %v645 = vmax.f32 %v643, %v644
    %v646 = vrot.slane %v645, 2
    %v647 = vmax.f32 %v645, %v646
    %v648 = vrot.slane %v647, 1
    %v649 = vmax.f32 %v647, %v648
    %v650 = vsel %vm343, %v550, -inf
    %v651 = vrot.slane %v650, 4
    %v652 = vmax.f32 %v650, %v651
    %v653 = vrot.slane %v652, 2
    %v654 = vmax.f32 %v652, %v653
    %v655 = vrot.slane %v654, 1
    %v656 = vmax.f32 %v654, %v655
    %v657 = vsel %vm343, %v551, -inf
    %v658 = vrot.slane %v657, 4
    %v659 = vmax.f32 %v657, %v658
    %v660 = vrot.slane %v659, 2
    %v661 = vmax.f32 %v659, %v660
    %v662 = vrot.slane %v661, 1
    %v663 = vmax.f32 %v661, %v662
    %v664 = vmax.f32 %v456, %v558
    %v665 = vmax.f32 %v457, %v565
    %v666 = vmax.f32 %v458, %v572
    %v667 = vmax.f32 %v459, %v579
    %v668 = vmax.f32 %v460, %v586
    %v669 = vmax.f32 %v461, %v593
    %v670 = vmax.f32 %v462, %v600
    %v671 = vmax.f32 %v463, %v607
    %v672 = vmax.f32 %v464, %v614
    %v673 = vmax.f32 %v465, %v621
    %v674 = vmax.f32 %v466, %v628
    %v675 = vmax.f32 %v467, %v635
    %v676 = vmax.f32 %v468, %v642
    %v677 = vmax.f32 %v469, %v649
    %v678 = vmax.f32 %v470, %v656
    %v679 = vmax.f32 %v471, %v663
    %s681 = sor.u32 256, 80
    %682 = vbcast.lane.b32.xlu0 %v202, %s681
    %v683 = vpop.permute.xlu0 %682
    %s685 = sor.u32 256, 80
    %686 = vbcast.lane.b32.xlu0 %v210, %s685
    %v687 = vpop.permute.xlu0 %686
    %s689 = sor.u32 256, 80
    %690 = vbcast.lane.b32.xlu0 %v218, %s689
    %v691 = vpop.permute.xlu0 %690
    %s693 = sor.u32 256, 80
    %694 = vbcast.lane.b32.xlu0 %v226, %s693
    %v695 = vpop.permute.xlu0 %694
    %s697 = sor.u32 256, 80
    %698 = vbcast.lane.b32.xlu0 %v234, %s697
    %v699 = vpop.permute.xlu0 %698
    %s701 = sor.u32 256, 80
    %702 = vbcast.lane.b32.xlu0 %v242, %s701
    %v703 = vpop.permute.xlu0 %702
    %s705 = sor.u32 256, 80
    %706 = vbcast.lane.b32.xlu0 %v250, %s705
    %v707 = vpop.permute.xlu0 %706
    %s709 = sor.u32 256, 80
    %710 = vbcast.lane.b32.xlu0 %v258, %s709
    %v711 = vpop.permute.xlu0 %710
    %s713 = sor.u32 256, 80
    %714 = vbcast.lane.b32.xlu0 %v266, %s713
    %v715 = vpop.permute.xlu0 %714
    %s717 = sor.u32 256, 80
    %718 = vbcast.lane.b32.xlu0 %v274, %s717
    %v719 = vpop.permute.xlu0 %718
    %s721 = sor.u32 256, 80
    %722 = vbcast.lane.b32.xlu0 %v282, %s721
    %v723 = vpop.permute.xlu0 %722
    %s725 = sor.u32 256, 80
    %726 = vbcast.lane.b32.xlu0 %v290, %s725
    %v727 = vpop.permute.xlu0 %726
    %s729 = sor.u32 256, 80
    %730 = vbcast.lane.b32.xlu0 %v298, %s729
    %v731 = vpop.permute.xlu0 %730
    %s733 = sor.u32 256, 80
    %734 = vbcast.lane.b32.xlu0 %v306, %s733
    %v735 = vpop.permute.xlu0 %734
    %s737 = sor.u32 256, 80
    %738 = vbcast.lane.b32.xlu0 %v314, %s737
    %v739 = vpop.permute.xlu0 %738
    %s741 = sor.u32 256, 80
    %742 = vbcast.lane.b32.xlu0 %v322, %s741
    %v743 = vpop.permute.xlu0 %742
    %v744 = vadd.f32 %v196, %v683
    %v745 = vadd.f32 %v196, %v687
    %v746 = vadd.f32 %v196, %v691
    %v747 = vadd.f32 %v196, %v695
    %v748 = vadd.f32 %v196, %v699
    %v749 = vadd.f32 %v196, %v703
    %v750 = vadd.f32 %v196, %v707
    %v751 = vadd.f32 %v196, %v711
    %v752 = vadd.f32 %v196, %v715
    %v753 = vadd.f32 %v196, %v719
    %v754 = vadd.f32 %v196, %v723
    %v755 = vadd.f32 %v196, %v727
    %v756 = vadd.f32 %v196, %v731
    %v757 = vadd.f32 %v196, %v735
    %v758 = vadd.f32 %v196, %v739
    %v759 = vadd.f32 %v196, %v743
    %v760 = vsel %vm343, %v744, -inf
    %v761 = vrot.slane %v760, 4
    %v762 = vmax.f32 %v760, %v761
    %v763 = vrot.slane %v762, 2
    %v764 = vmax.f32 %v762, %v763
    %v765 = vrot.slane %v764, 1
    %v766 = vmax.f32 %v764, %v765
    %v767 = vsel %vm343, %v745, -inf
    %v768 = vrot.slane %v767, 4
    %v769 = vmax.f32 %v767, %v768
    %v770 = vrot.slane %v769, 2
    %v771 = vmax.f32 %v769, %v770
    %v772 = vrot.slane %v771, 1
    %v773 = vmax.f32 %v771, %v772
    %v774 = vsel %vm343, %v746, -inf
    %v775 = vrot.slane %v774, 4
    %v776 = vmax.f32 %v774, %v775
    %v777 = vrot.slane %v776, 2
    %v778 = vmax.f32 %v776, %v777
    %v779 = vrot.slane %v778, 1
    %v780 = vmax.f32 %v778, %v779
    %v781 = vsel %vm343, %v747, -inf
    %v782 = vrot.slane %v781, 4
    %v783 = vmax.f32 %v781, %v782
    %v784 = vrot.slane %v783, 2
    %v785 = vmax.f32 %v783, %v784
    %v786 = vrot.slane %v785, 1
    %v787 = vmax.f32 %v785, %v786
    %v788 = vsel %vm343, %v748, -inf
    %v789 = vrot.slane %v788, 4
    %v790 = vmax.f32 %v788, %v789
    %v791 = vrot.slane %v790, 2
    %v792 = vmax.f32 %v790, %v791
    %v793 = vrot.slane %v792, 1
    %v794 = vmax.f32 %v792, %v793
    %v795 = vsel %vm343, %v749, -inf
    %v796 = vrot.slane %v795, 4
    %v797 = vmax.f32 %v795, %v796
    %v798 = vrot.slane %v797, 2
    %v799 = vmax.f32 %v797, %v798
    %v800 = vrot.slane %v799, 1
    %v801 = vmax.f32 %v799, %v800
    %v802 = vsel %vm343, %v750, -inf
    %v803 = vrot.slane %v802, 4
    %v804 = vmax.f32 %v802, %v803
    %v805 = vrot.slane %v804, 2
    %v806 = vmax.f32 %v804, %v805
    %v807 = vrot.slane %v806, 1
    %v808 = vmax.f32 %v806, %v807
    %v809 = vsel %vm343, %v751, -inf
    %v810 = vrot.slane %v809, 4
    %v811 = vmax.f32 %v809, %v810
    %v812 = vrot.slane %v811, 2
    %v813 = vmax.f32 %v811, %v812
    %v814 = vrot.slane %v813, 1
    %v815 = vmax.f32 %v813, %v814
    %v816 = vsel %vm343, %v752, -inf
    %v817 = vrot.slane %v816, 4
    %v818 = vmax.f32 %v816, %v817
    %v819 = vrot.slane %v818, 2
    %v820 = vmax.f32 %v818, %v819
    %v821 = vrot.slane %v820, 1
    %v822 = vmax.f32 %v820, %v821
    %v823 = vsel %vm343, %v753, -inf
    %v824 = vrot.slane %v823, 4
    %v825 = vmax.f32 %v823, %v824
    %v826 = vrot.slane %v825, 2
    %v827 = vmax.f32 %v825, %v826
    %v828 = vrot.slane %v827, 1
    %v829 = vmax.f32 %v827, %v828
    %v830 = vsel %vm343, %v754, -inf
    %v831 = vrot.slane %v830, 4
    %v832 = vmax.f32 %v830, %v831
    %v833 = vrot.slane %v832, 2
    %v834 = vmax.f32 %v832, %v833
    %v835 = vrot.slane %v834, 1
    %v836 = vmax.f32 %v834, %v835
    %v837 = vsel %vm343, %v755, -inf
    %v838 = vrot.slane %v837, 4
    %v839 = vmax.f32 %v837, %v838
    %v840 = vrot.slane %v839, 2
    %v841 = vmax.f32 %v839, %v840
    %v842 = vrot.slane %v841, 1
    %v843 = vmax.f32 %v841, %v842
    %v844 = vsel %vm343, %v756, -inf
    %v845 = vrot.slane %v844, 4
    %v846 = vmax.f32 %v844, %v845
    %v847 = vrot.slane %v846, 2
    %v848 = vmax.f32 %v846, %v847
    %v849 = vrot.slane %v848, 1
    %v850 = vmax.f32 %v848, %v849
    %v851 = vsel %vm343, %v757, -inf
    %v852 = vrot.slane %v851, 4
    %v853 = vmax.f32 %v851, %v852
    %v854 = vrot.slane %v853, 2
    %v855 = vmax.f32 %v853, %v854
    %v856 = vrot.slane %v855, 1
    %v857 = vmax.f32 %v855, %v856
    %v858 = vsel %vm343, %v758, -inf
    %v859 = vrot.slane %v858, 4
    %v860 = vmax.f32 %v858, %v859
    %v861 = vrot.slane %v860, 2
    %v862 = vmax.f32 %v860, %v861
    %v863 = vrot.slane %v862, 1
    %v864 = vmax.f32 %v862, %v863
    %v865 = vsel %vm343, %v759, -inf
    %v866 = vrot.slane %v865, 4
    %v867 = vmax.f32 %v865, %v866
    %v868 = vrot.slane %v867, 2
    %v869 = vmax.f32 %v867, %v868
    %v870 = vrot.slane %v869, 1
    %v871 = vmax.f32 %v869, %v870
    %v872 = vmax.f32 %v664, %v766
    %v873 = vmax.f32 %v665, %v773
    %v874 = vmax.f32 %v666, %v780
    %v875 = vmax.f32 %v667, %v787
    %v876 = vmax.f32 %v668, %v794
    %v877 = vmax.f32 %v669, %v801
    %v878 = vmax.f32 %v670, %v808
    %v879 = vmax.f32 %v671, %v815
    %v880 = vmax.f32 %v672, %v822
    %v881 = vmax.f32 %v673, %v829
    %v882 = vmax.f32 %v674, %v836
    %v883 = vmax.f32 %v675, %v843
    %v884 = vmax.f32 %v676, %v850
    %v885 = vmax.f32 %v677, %v857
    %v886 = vmax.f32 %v678, %v864
    %v887 = vmax.f32 %v679, %v871
    %v888 = vld [vmem:[%s1] sm:$0xff]
    %v889 = vld [vmem:[%s1 + $0x10] sm:$0xff]
    %v892 = vrot.slane %v888, 1
    %v893 = vrot.slane %v888, 2
    %v894 = vrot.slane %v888, 3
    %v895 = vrot.slane %v888, 4
    %v896 = vrot.slane %v888, 5
    %v897 = vrot.slane %v888, 6
    %v898 = vrot.slane %v888, 7
    %v899 = vrot.slane %v889, 1
    %v900 = vrot.slane %v889, 2
    %v901 = vrot.slane %v889, 3
    %v902 = vrot.slane %v889, 4
    %v903 = vrot.slane %v889, 5
    %v904 = vrot.slane %v889, 6
    %v905 = vrot.slane %v889, 7
    %v922 = vadd.f32 %v872, %v888
    %v923 = vadd.f32 %v873, %v892
    %v924 = vadd.f32 %v874, %v893
    %v925 = vadd.f32 %v875, %v894
    %v926 = vadd.f32 %v876, %v895
    %v927 = vadd.f32 %v877, %v896
    %v928 = vadd.f32 %v878, %v897
    %v929 = vadd.f32 %v879, %v898
    %v930 = vadd.f32 %v880, %v889
    %v931 = vadd.f32 %v881, %v899
    %v932 = vadd.f32 %v882, %v900
    %v933 = vadd.f32 %v883, %v901
    %v934 = vadd.f32 %v884, %v902
    %v935 = vadd.f32 %v885, %v903
    %v936 = vadd.f32 %v886, %v904
    %v937 = vadd.f32 %v887, %v905
    %938 = vrot.lane.b32.xlu0 %v888, 96
    %v939 = vpop.permute.xlu0 %938
    %940 = vrot.lane.b32.xlu0 %v892, 96
    %v941 = vpop.permute.xlu0 %940
    %942 = vrot.lane.b32.xlu0 %v893, 96
    %v943 = vpop.permute.xlu0 %942
    %944 = vrot.lane.b32.xlu0 %v894, 96
    %v945 = vpop.permute.xlu0 %944
    %946 = vrot.lane.b32.xlu0 %v895, 96
    %v947 = vpop.permute.xlu0 %946
    %948 = vrot.lane.b32.xlu0 %v896, 96
    %v949 = vpop.permute.xlu0 %948
    %950 = vrot.lane.b32.xlu0 %v897, 96
    %v951 = vpop.permute.xlu0 %950
    %952 = vrot.lane.b32.xlu0 %v898, 96
    %v953 = vpop.permute.xlu0 %952
    %954 = vrot.lane.b32.xlu0 %v889, 96
    %v955 = vpop.permute.xlu0 %954
    %956 = vrot.lane.b32.xlu0 %v899, 96
    %v957 = vpop.permute.xlu0 %956
    %958 = vrot.lane.b32.xlu0 %v900, 96
    %v959 = vpop.permute.xlu0 %958
    %960 = vrot.lane.b32.xlu0 %v901, 96
    %v961 = vpop.permute.xlu0 %960
    %962 = vrot.lane.b32.xlu0 %v902, 96
    %v963 = vpop.permute.xlu0 %962
    %964 = vrot.lane.b32.xlu0 %v903, 96
    %v965 = vpop.permute.xlu0 %964
    %966 = vrot.lane.b32.xlu0 %v904, 96
    %v967 = vpop.permute.xlu0 %966
    %968 = vrot.lane.b32.xlu0 %v905, 96
    %v969 = vpop.permute.xlu0 %968
    %v986 = vmul.f32 %v922, %v939
    %v987 = vmul.f32 %v923, %v941
    %v988 = vmul.f32 %v924, %v943
    %v989 = vmul.f32 %v925, %v945
    %v990 = vmul.f32 %v926, %v947
    %v991 = vmul.f32 %v927, %v949
    %v992 = vmul.f32 %v928, %v951
    %v993 = vmul.f32 %v929, %v953
    %v994 = vmul.f32 %v930, %v955
    %v995 = vmul.f32 %v931, %v957
    %v996 = vmul.f32 %v932, %v959
    %v997 = vmul.f32 %v933, %v961
    %v998 = vmul.f32 %v934, %v963
    %v999 = vmul.f32 %v935, %v965
    %v1000 = vmul.f32 %v936, %v967
    %v1001 = vmul.f32 %v937, %v969
    %v1002 = vmul.f32 %v986, %v986
    %v1003 = vmul.f32 %v987, %v987
    %v1004 = vmul.f32 %v988, %v988
    %v1005 = vmul.f32 %v989, %v989
    %v1006 = vmul.f32 %v990, %v990
    %v1007 = vmul.f32 %v991, %v991
    %v1008 = vmul.f32 %v992, %v992
    %v1009 = vmul.f32 %v993, %v993
    %v1010 = vmul.f32 %v994, %v994
    %v1011 = vmul.f32 %v995, %v995
    %v1012 = vmul.f32 %v996, %v996
    %v1013 = vmul.f32 %v997, %v997
    %v1014 = vmul.f32 %v998, %v998
    %v1015 = vmul.f32 %v999, %v999
    %v1016 = vmul.f32 %v1000, %v1000
    %v1017 = vmul.f32 %v1001, %v1001
    %v1034 = vrot.slane %v987, 7
    %vm1035 = vcmask 1041409
    %v1036 = vsel %vm1035, %v1034, %v986
    %v1037 = vrot.slane %v988, 6
    %vm1038 = vcmask 1042434
    %v1039 = vsel %vm1038, %v1037, %v1036
    %v1040 = vrot.slane %v989, 5
    %vm1041 = vcmask 1043459
    %v1042 = vsel %vm1041, %v1040, %v1039
    %v1043 = vrot.slane %v990, 4
    %vm1044 = vcmask 1044484
    %v1045 = vsel %vm1044, %v1043, %v1042
    %v1046 = vrot.slane %v991, 3
    %vm1047 = vcmask 1045509
    %v1048 = vsel %vm1047, %v1046, %v1045
    %v1049 = vrot.slane %v992, 2
    %vm1050 = vcmask 1046534
    %v1051 = vsel %vm1050, %v1049, %v1048
    %v1052 = vrot.slane %v993, 1
    %vm1053 = vcmask 1047559
    %v1054 = vsel %vm1053, %v1052, %v1051
    %v1055 = vrot.slane %v995, 7
    %v1056 = vsel %vm1035, %v1055, %v994
    %v1057 = vrot.slane %v996, 6
    %v1058 = vsel %vm1038, %v1057, %v1056
    %v1059 = vrot.slane %v997, 5
    %v1060 = vsel %vm1041, %v1059, %v1058
    %v1061 = vrot.slane %v998, 4
    %v1062 = vsel %vm1044, %v1061, %v1060
    %v1063 = vrot.slane %v999, 3
    %v1064 = vsel %vm1047, %v1063, %v1062
    %v1065 = vrot.slane %v1000, 2
    %v1066 = vsel %vm1050, %v1065, %v1064
    %v1067 = vrot.slane %v1001, 1
    %v1068 = vsel %vm1053, %v1067, %v1066
    %v1087 = vrot.slane %v1003, 7
    %v1088 = vsel %vm1035, %v1087, %v1002
    %v1089 = vrot.slane %v1004, 6
    %v1090 = vsel %vm1038, %v1089, %v1088
    %v1091 = vrot.slane %v1005, 5
    %v1092 = vsel %vm1041, %v1091, %v1090
    %v1093 = vrot.slane %v1006, 4
    %v1094 = vsel %vm1044, %v1093, %v1092
    %v1095 = vrot.slane %v1007, 3
    %v1096 = vsel %vm1047, %v1095, %v1094
    %v1097 = vrot.slane %v1008, 2
    %v1098 = vsel %vm1050, %v1097, %v1096
    %v1099 = vrot.slane %v1009, 1
    %v1100 = vsel %vm1053, %v1099, %v1098
    %v1101 = vrot.slane %v1011, 7
    %v1102 = vsel %vm1035, %v1101, %v1010
    %v1103 = vrot.slane %v1012, 6
    %v1104 = vsel %vm1038, %v1103, %v1102
    %v1105 = vrot.slane %v1013, 5
    %v1106 = vsel %vm1041, %v1105, %v1104
    %v1107 = vrot.slane %v1014, 4
    %v1108 = vsel %vm1044, %v1107, %v1106
    %v1109 = vrot.slane %v1015, 3
    %v1110 = vsel %vm1047, %v1109, %v1108
    %v1111 = vrot.slane %v1016, 2
    %v1112 = vsel %vm1050, %v1111, %v1110
    %v1113 = vrot.slane %v1017, 1
    %v1114 = vsel %vm1053, %v1113, %v1112
    %1115 = vrot.lane.b32.xlu0 %v1100, 32
    %v1116 = vpop.permute.xlu0 %1115
    %1117 = vrot.lane.b32.xlu0 %v1114, 32
    %v1118 = vpop.permute.xlu0 %1117
    %v1121 = vsel %vm343, %v1054, %v1116
    %v1122 = vsel %vm343, %v1068, %v1118
    %1123 = vrot.lane.b32.xlu0 %v15, 40
    %v1124 = vpop.permute.xlu0 %1123
    %1125 = vrot.lane.b32.xlu0 %v16, 40
    %v1126 = vpop.permute.xlu0 %1125
    %v1127 = vsel %vm109, %v1124, 0
    %v1129 = vsel %vm109, %v1126, 0
    %1131 = vmatprep.subr.mxu0 0.0
    %1132 = vmatpush1.msra.mxu0 %v1121
    %1133 = vmatprep.subr.mxu0 0.0
    %1134 = vmatpush1.msra.mxu0 %v1122
    %1135 = vmatprep.subr.mxu0 0.0
    %1136 = vmatpush1.msra.mxu0 0.0
    %1137 = vmatprep.subr.mxu0 0.0
    %1138 = vmatpush1.msra.mxu0 0.0
    %1139 = vmatprep.subr.mxu0 0.0
    %1140 = vmatpush1.msra.mxu0 0.0
    %1141 = vmatprep.subr.mxu0 0.0
    %1142 = vmatpush1.msra.mxu0 0.0
    %1143 = vmatprep.subr.mxu0 0.0
    %1144 = vmatpush1.msra.mxu0 0.0
    %1145 = vmatprep.subr.mxu0 0.0
    %1146 = vmatpush1.msra.mxu0 0.0
    %1147 = vmatprep.subr.mxu0 0.0
    %1148 = vmatpush1.msra.mxu0 0.0
    %1149 = vmatprep.subr.mxu0 0.0
    %1150 = vmatpush1.msra.mxu0 0.0
    %1151 = vmatprep.subr.mxu0 0.0
    %1152 = vmatpush1.msra.mxu0 0.0
    %1153 = vmatprep.subr.mxu0 0.0
    %1154 = vmatpush1.msra.mxu0 0.0
    %1155 = vmatprep.subr.mxu0 0.0
    %1156 = vmatpush1.msra.mxu0 0.0
    %1157 = vmatprep.subr.mxu0 0.0
    %1158 = vmatpush1.msra.mxu0 0.0
    %1159 = vmatprep.subr.mxu0 0.0
    %1160 = vmatpush1.msra.mxu0 0.0
    %1161 = vmatprep.subr.mxu0 0.0
    %1162 = vmatpush1.msra.mxu0 0.0
    %1163 = vmatprep.subr.mxu0 0.0
    %1164 = vmatpush1.msra.mxu0 0.0
    %1165 = vmatprep.subr.mxu0 0.0
    %1166 = vmatpush1.msra.mxu0 0.0
    %1167 = vmatprep.subr.mxu0 0.0
    %1168 = vmatpush1.msra.mxu0 0.0
    %1169 = vmatprep.subr.mxu0 0.0
    %1170 = vmatpush1.msra.mxu0 0.0
    %1171 = vmatprep.subr.mxu0 0.0
    %1172 = vmatpush1.msra.mxu0 0.0
    %1173 = vmatprep.subr.mxu0 0.0
    %1174 = vmatpush1.msra.mxu0 0.0
    %1175 = vmatprep.subr.mxu0 0.0
    %1176 = vmatpush1.msra.mxu0 0.0
    %1177 = vmatprep.subr.mxu0 0.0
    %1178 = vmatpush1.msra.mxu0 0.0
    %1179 = vmatprep.subr.mxu0 0.0
    %1180 = vmatpush1.msra.mxu0 0.0
    %1181 = vmatprep.subr.mxu0 0.0
    %1182 = vmatpush1.msra.mxu0 0.0
    %1183 = vmatprep.subr.mxu0 0.0
    %1184 = vmatpush1.msra.mxu0 0.0
    %1185 = vmatprep.subr.mxu0 0.0
    %1186 = vmatpush1.msra.mxu0 0.0
    %1187 = vmatprep.subr.mxu0 0.0
    %1188 = vmatpush1.msra.mxu0 0.0
    %1189 = vmatprep.subr.mxu0 0.0
    %1190 = vmatpush1.msra.mxu0 0.0
    %1191 = vmatprep.subr.mxu0 0.0
    %1192 = vmatpush1.msra.mxu0 0.0
    %1193 = vmatprep.subr.mxu0 0.0
    %1194 = vmatpush1.msra.mxu0 0.0
    %1195 = vmatprep.mubr.f32.mxu0 0.0
    %1196 = vmatmul.mubr.f32.gmra.mrb[0].mxu0 %v1127
    %v1197 = vpop.f32.mrb[0].mxu0
    %v1198 = vadd.f32 0.0, %v1197
    %v1199 = vpop.f32.mrb[0].mxu0
    %1200 = vmatprep.mubr.f32.mxu0 0.0
    %1201 = vmatmul.mubr.f32.gmra.mrb[0].mxu0 %v1129
    %v1202 = vpop.f32.mrb[0].mxu0
    %v1203 = vadd.f32 0.0, %v1202
    %v1204 = vpop.f32.mrb[0].mxu0
    %1205 = vdwg.mxu0
    %1206 = vrot.lane.b32.xlu0 %v888, 64
    %v1207 = vpop.permute.xlu0 %1206
    %1208 = vrot.lane.b32.xlu0 %v889, 64
    %v1209 = vpop.permute.xlu0 %1208
    %v1212 = vmul.f32 %v1198, %v1207
    %v1213 = vmul.f32 %v1203, %v1209
    %v1216 = vrot.slane %v1212, 1
    %v1217 = vrot.slane %v1212, 2
    %v1218 = vrot.slane %v1212, 3
    %v1219 = vrot.slane %v1212, 4
    %v1220 = vrot.slane %v1212, 5
    %v1221 = vrot.slane %v1212, 6
    %v1222 = vrot.slane %v1212, 7
    %v1223 = vrot.slane %v1213, 1
    %v1224 = vrot.slane %v1213, 2
    %v1225 = vrot.slane %v1213, 3
    %v1226 = vrot.slane %v1213, 4
    %v1227 = vrot.slane %v1213, 5
    %v1228 = vrot.slane %v1213, 6
    %v1229 = vrot.slane %v1213, 7
    %v1246 = vsub.f32 %v986, %v1212
    %v1247 = vsub.f32 %v987, %v1216
    %v1248 = vsub.f32 %v988, %v1217
    %v1249 = vsub.f32 %v989, %v1218
    %v1250 = vsub.f32 %v990, %v1219
    %v1251 = vsub.f32 %v991, %v1220
    %v1252 = vsub.f32 %v992, %v1221
    %v1253 = vsub.f32 %v993, %v1222
    %v1254 = vsub.f32 %v994, %v1213
    %v1255 = vsub.f32 %v995, %v1223
    %v1256 = vsub.f32 %v996, %v1224
    %v1257 = vsub.f32 %v997, %v1225
    %v1258 = vsub.f32 %v998, %v1226
    %v1259 = vsub.f32 %v999, %v1227
    %v1260 = vsub.f32 %v1000, %v1228
    %v1261 = vsub.f32 %v1001, %v1229
    %v1262 = vsub.f32 2.0, %v888
    %v1263 = vsub.f32 2.0, %v889
    %v1264 = vmul.f32 %v888, %v1262
    %v1265 = vmul.f32 %v889, %v1263
    %v1266 = vmul.f32 %v1198, %v1198
    %v1267 = vmul.f32 %v1203, %v1203
    %1270 = vrot.lane.b32.xlu0 %v1266, 64
    %v1271 = vpop.permute.xlu0 %1270
    %1272 = vrot.lane.b32.xlu0 %v1267, 64
    %v1273 = vpop.permute.xlu0 %1272
    %v1276 = vmul.f32 %v1264, %v1271
    %v1277 = vmul.f32 %v1265, %v1273
    %1280 = vrot.lane.b32.xlu0 %v1276, 96
    %v1281 = vpop.permute.xlu0 %1280
    %1282 = vrot.lane.b32.xlu0 %v1277, 96
    %v1283 = vpop.permute.xlu0 %1282
    %v1286 = vsub.f32 %v1198, %v1281
    %v1287 = vsub.f32 %v1203, %v1283
    %v1288 = vmax.f32 %v1286, 0.0
    %v1289 = vmax.f32 %v1287, 0.0
    %v1290 = vadd.f32 %v1288, 1e-05
    %v1291 = vadd.f32 %v1289, 1e-05
    %v1292 = vrsqrt.pop %v1290
    %v1293 = vrsqrt.pop %v1291
    %v1310 = vrot.slane %v1247, 7
    %v1311 = vsel %vm1035, %v1310, %v1246
    %v1312 = vrot.slane %v1248, 6
    %v1313 = vsel %vm1038, %v1312, %v1311
    %v1314 = vrot.slane %v1249, 5
    %v1315 = vsel %vm1041, %v1314, %v1313
    %v1316 = vrot.slane %v1250, 4
    %v1317 = vsel %vm1044, %v1316, %v1315
    %v1318 = vrot.slane %v1251, 3
    %v1319 = vsel %vm1047, %v1318, %v1317
    %v1320 = vrot.slane %v1252, 2
    %v1321 = vsel %vm1050, %v1320, %v1319
    %v1322 = vrot.slane %v1253, 1
    %v1323 = vsel %vm1053, %v1322, %v1321
    %v1324 = vrot.slane %v1255, 7
    %v1325 = vsel %vm1035, %v1324, %v1254
    %v1326 = vrot.slane %v1256, 6
    %v1327 = vsel %vm1038, %v1326, %v1325
    %v1328 = vrot.slane %v1257, 5
    %v1329 = vsel %vm1041, %v1328, %v1327
    %v1330 = vrot.slane %v1258, 4
    %v1331 = vsel %vm1044, %v1330, %v1329
    %v1332 = vrot.slane %v1259, 3
    %v1333 = vsel %vm1047, %v1332, %v1331
    %v1334 = vrot.slane %v1260, 2
    %v1335 = vsel %vm1050, %v1334, %v1333
    %v1336 = vrot.slane %v1261, 1
    %v1337 = vsel %vm1053, %v1336, %v1335
    %1338 = vrot.lane.b32.xlu0 %v1323, 96
    %v1339 = vpop.permute.xlu0 %1338
    %1340 = vrot.lane.b32.xlu0 %v1337, 96
    %v1341 = vpop.permute.xlu0 %1340
    %v1344 = vmul.f32 %v888, %v1339
    %v1345 = vmul.f32 %v889, %v1341
    %1348 = vrot.lane.b32.xlu0 %v1292, 64
    %v1349 = vpop.permute.xlu0 %1348
    %1350 = vrot.lane.b32.xlu0 %v1293, 64
    %v1351 = vpop.permute.xlu0 %1350
    %v1354 = vmul.f32 %v1344, %v1349
    %v1355 = vmul.f32 %v1345, %v1351
    %1356 = vrot.lane.b32.xlu0 %v15, 96
    %v1357 = vpop.permute.xlu0 %1356
    %1358 = vrot.lane.b32.xlu0 %v16, 96
    %v1359 = vpop.permute.xlu0 %1358
    %v1362 = vadd.f32 %v1354, %v1357
    %v1363 = vadd.f32 %v1355, %v1359
    %v1364 = vmax.f32 %v1362, 0.0
    %v1365 = vmax.f32 %v1363, 0.0
    %v1366 = vld [vmem:[%s2 + $0x10] sm:$0xff]
    %v1367 = vld [vmem:[%s2 + $0x18] sm:$0xff]
    %v1368 = vld [vmem:[%s2 + $0x20] sm:$0xff]
    %v1369 = vld [vmem:[%s2 + $0x28] sm:$0xff]
    %1372 = vrot.lane.b32.xlu0 %v1364, 32
    %v1373 = vpop.permute.xlu0 %1372
    %1374 = vrot.lane.b32.xlu0 %v1365, 32
    %v1375 = vpop.permute.xlu0 %1374
    %v1376 = vsel %vm343, %v1373, 0
    %v1378 = vsel %vm343, %v1375, 0
    %1380 = vmatprep.subr.mxu0 0.0
    %1381 = vmatpush1.msra.mxu0 %v1366
    %1382 = vmatprep.subr.mxu0 0.0
    %1383 = vmatpush1.msra.mxu0 %v1367
    %1384 = vmatprep.subr.mxu0 0.0
    %1385 = vmatpush1.msra.mxu0 %v1368
    %1386 = vmatprep.subr.mxu0 0.0
    %1387 = vmatpush1.msra.mxu0 %v1369
    %1388 = vmatprep.subr.mxu0 0.0
    %1389 = vmatpush1.msra.mxu0 0.0
    %1390 = vmatprep.subr.mxu0 0.0
    %1391 = vmatpush1.msra.mxu0 0.0
    %1392 = vmatprep.subr.mxu0 0.0
    %1393 = vmatpush1.msra.mxu0 0.0
    %1394 = vmatprep.subr.mxu0 0.0
    %1395 = vmatpush1.msra.mxu0 0.0
    %1396 = vmatprep.subr.mxu0 0.0
    %1397 = vmatpush1.msra.mxu0 0.0
    %1398 = vmatprep.subr.mxu0 0.0
    %1399 = vmatpush1.msra.mxu0 0.0
    %1400 = vmatprep.subr.mxu0 0.0
    %1401 = vmatpush1.msra.mxu0 0.0
    %1402 = vmatprep.subr.mxu0 0.0
    %1403 = vmatpush1.msra.mxu0 0.0
    %1404 = vmatprep.subr.mxu0 0.0
    %1405 = vmatpush1.msra.mxu0 0.0
    %1406 = vmatprep.subr.mxu0 0.0
    %1407 = vmatpush1.msra.mxu0 0.0
    %1408 = vmatprep.subr.mxu0 0.0
    %1409 = vmatpush1.msra.mxu0 0.0
    %1410 = vmatprep.subr.mxu0 0.0
    %1411 = vmatpush1.msra.mxu0 0.0
    %1412 = vmatprep.subr.mxu0 0.0
    %1413 = vmatpush1.msra.mxu0 0.0
    %1414 = vmatprep.subr.mxu0 0.0
    %1415 = vmatpush1.msra.mxu0 0.0
    %1416 = vmatprep.subr.mxu0 0.0
    %1417 = vmatpush1.msra.mxu0 0.0
    %1418 = vmatprep.subr.mxu0 0.0
    %1419 = vmatpush1.msra.mxu0 0.0
    %1420 = vmatprep.subr.mxu0 0.0
    %1421 = vmatpush1.msra.mxu0 0.0
    %1422 = vmatprep.subr.mxu0 0.0
    %1423 = vmatpush1.msra.mxu0 0.0
    %1424 = vmatprep.subr.mxu0 0.0
    %1425 = vmatpush1.msra.mxu0 0.0
    %1426 = vmatprep.subr.mxu0 0.0
    %1427 = vmatpush1.msra.mxu0 0.0
    %1428 = vmatprep.subr.mxu0 0.0
    %1429 = vmatpush1.msra.mxu0 0.0
    %1430 = vmatprep.subr.mxu0 0.0
    %1431 = vmatpush1.msra.mxu0 0.0
    %1432 = vmatprep.subr.mxu0 0.0
    %1433 = vmatpush1.msra.mxu0 0.0
    %1434 = vmatprep.subr.mxu0 0.0
    %1435 = vmatpush1.msra.mxu0 0.0
    %1436 = vmatprep.subr.mxu0 0.0
    %1437 = vmatpush1.msra.mxu0 0.0
    %1438 = vmatprep.subr.mxu0 0.0
    %1439 = vmatpush1.msra.mxu0 0.0
    %1440 = vmatprep.subr.mxu0 0.0
    %1441 = vmatpush1.msra.mxu0 0.0
    %1442 = vmatprep.subr.mxu0 0.0
    %1443 = vmatpush1.msra.mxu0 0.0
    %1444 = vmatprep.mubr.f32.mxu0 0.0
    %1445 = vmatmul.mubr.f32.gmra.mrb[0].mxu0 %v1376
    %v1446 = vpop.f32.mrb[0].mxu0
    %v1447 = vadd.f32 %v96, %v1446
    %v1448 = vpop.f32.mrb[0].mxu0
    %1449 = vmatprep.mubr.f32.mxu0 0.0
    %1450 = vmatmul.mubr.f32.gmra.mrb[0].mxu0 %v1378
    %v1451 = vpop.f32.mrb[0].mxu0
    %v1452 = vadd.f32 %v101, %v1451
    %v1453 = vpop.f32.mrb[0].mxu0
    %1454 = vdwg.mxu0
    %v1455 = vadd.f32 %v1447, %v1357
    %v1456 = vadd.f32 %v1452, %v1359
    %1457 = vst.msk [vmem:[#allocation2] sm:$0xff] %vm343, %v1455
    %1458 = vst.msk [vmem:[#allocation2 + $0x8] sm:$0xff] %vm343, %v1456
    // Predicated region
    $region14: #{perconv_forward.1} parent=1 // pred_check
      _
    $region15: #{perconv_forward.1} parent=1 // pred_check_branch
      %1460 = sbr.rel (0) target = $region17
    $region16: #{perconv_forward.1} parent=1 // pred_region
      %s1462 = ssub.s32 256, 256
      %1463 = vsyncadd [#allocation3], %s1462
      %s1464 = sshll.u32 [#allocation2], 4
      %s1465 = int_to_ptr.vmem [resolvable:$true] %s1464
      %1470 = dma.vmem_to_hbm [thread:$0]  %s1465, 256, %s3, [#allocation3], 128, 128, 8
    $region17: #{perconv_forward.1} parent=1 // pred_fallthru
      _
    // Predicated region
    $region18: #{perconv_forward.1} parent=1 // pred_check
      _
    $region19: #{perconv_forward.1} parent=1 // pred_check_branch
      %1472 = sbr.rel (0) target = $region21
    $region20: #{perconv_forward.1} parent=1 // pred_region
      %1473 = dma.done [#allocation3], 256
    $region21: #{perconv_forward.1} parent=1 // pred_fallthru
      _
    %1474 = vsyncpa [#allocation3], 1

</llo_original>
